<compile_context>
chip_gen: v7x
topology: tpu7x:2x2x1
jax: 0.10.0
libtpu: 0.0.40
codegen_flags: <defaults>
</compile_context>

<pallas_src>
import functools
import math

import jax
import jax.numpy as jnp
from jax.experimental import pallas as pl
from jax.experimental.pallas import tpu as pltpu


_LANE = 128


def _round_up(n, m):
    return ((n + m - 1) // m) * m


def _select_tile_rows(batch, feat, itemsize, tile_rows):
    """Pick the batch-tile row count (static, trace-time shapes).

    Kept a multiple of 128 so the lane-dense (1, TB) output blocks satisfy the
    (8, 128) block constraint even when batch is not a multiple of TB.
    """
    if tile_rows is not None:
        tb = int(tile_rows)
        if tb % _LANE != 0:
            raise ValueError("tile_rows must be a multiple of 128")
        return tb
    # Target ~8 MiB of x per tile (double-buffered ~16 MiB of VMEM), computed
    # with the *lane-padded* row width: a (TB, feat) tile occupies
    # round_up(feat, 128) * itemsize bytes per row in VMEM regardless of feat.
    budget = 8 * 1024 * 1024
    row_bytes = _round_up(max(feat, 1), _LANE) * itemsize
    tb = (budget // row_bytes) // _LANE * _LANE
    return max(_LANE, min(tb, 32768))


def _classifier_kernel(x_ref, w_ref, s_ref, *out_refs, want):
    """One batch tile -> requested subset of (logits, probs, preds).

    x_ref: (TB, D) VMEM tile in x's native dtype.
    w_ref: (1, D)  f32 VMEM weight row (same block every step -> resident).
    s_ref: (2,)    f32 SMEM scalars = [bias, threshold].
    Outputs are lane-dense (1, TB) blocks (batch on the lane axis) so stores
    are full-width vector stores.  The matvec uses the VPU (multiply) + XLU
    (lane reduce): with M=1 the MXU would be <1% utilized and an NT dot risks a
    full-tile transpose (perf review), while the kernel stays HBM-bound.
    """
    x = x_ref[...].astype(jnp.float32)            # cast in-kernel, not wrapper
    w = w_ref[...]                                # (1, D), broadcasts over rows
    bias = s_ref[0]
    logits = jnp.sum(x * w, axis=-1).reshape(1, -1) + bias   # (1, TB)

    refs = iter(out_refs)
    if want[0]:
        next(refs)[...] = logits
    if want[1] or want[2]:
        probs = jax.nn.sigmoid(logits)            # EUP exp + reciprocal
    if want[1]:
        next(refs)[...] = probs
    if want[2]:
        next(refs)[...] = (probs >= s_ref[1]).astype(jnp.int8)


def _classifier_forward_impl(x, w_row, scalars, *, want, tile_rows):
    """Fused forward: one pallas_call over batch tiles, no padding passes.

    Returns the requested subset of (logits (B,), probs (B,), preds (B,) i32).
    """
    batch, feat = x.shape
    tb = _select_tile_rows(batch, feat, x.dtype.itemsize, tile_rows)
    if batch <= tb:
        # Single tile: blocks equal the full (unpadded) array dims.
        block_rows, num_tiles = batch, 1
    else:
        # Multi-tile with a ragged last block: Pallas drops OOB lanes of the
        # final output block, so no jnp.pad / extra HBM pass over x is needed.
        block_rows, num_tiles = tb, pl.cdiv(batch, tb)

    out_shapes, out_specs = [], []
    for enabled, dt in zip(want, (jnp.float32, jnp.float32, jnp.int8)):
        if enabled:
            out_shapes.append(jax.ShapeDtypeStruct((1, batch), dt))
            out_specs.append(pl.BlockSpec((1, block_rows), lambda i: (0, i)))

    outs = pl.pallas_call(
        functools.partial(_classifier_kernel, want=want),
        out_shape=tuple(out_shapes),
        grid_spec=pltpu.PrefetchScalarGridSpec(
            num_scalar_prefetch=0,
            grid=(num_tiles,),
            in_specs=[
                # x: one (TB, D) batch tile per step, native dtype, auto DMA'd
                # with default double-buffering.
                pl.BlockSpec((block_rows, feat), lambda i: (i, 0)),
                # w: same block every step -> stays resident in VMEM.
                pl.BlockSpec((1, feat), lambda i: (0, 0)),
                # [bias, threshold] scalars in SMEM.
                pl.BlockSpec(memory_space=pltpu.MemorySpace.SMEM),
            ],
            out_specs=out_specs,
        ),
        compiler_params=pltpu.CompilerParams(
            dimension_semantics=("parallel",),   # shard batch tiles across TCs
            vmem_limit_bytes=40 * 1024 * 1024,   # safe on v7x (64 MiB/TC)
        ),
    )(x, w_row, scalars)

    results = []
    for o in outs:
        v = o.reshape(-1)
        results.append(v.astype(jnp.int32) if v.dtype == jnp.int8 else v)
    return tuple(results)


class PallasClassifier:
    """JAX/Pallas port of the PyTorch Classifier with a linear logit head g."""

    def __init__(self, in_features, actionable_mask=False,
                 actionable_features=None, threshold=0.0, key=None,
                 tile_rows=None):
        self.in_features = int(in_features)
        self.actionable_mask = actionable_mask
        self.actionable_features = actionable_features
        self._tile_rows = tile_rows

        d = len(actionable_features) if actionable_mask else in_features
        key = jax.random.PRNGKey(42) if key is None else key
        kw, kb = jax.random.split(key)
        # Deterministic synthetic parameters (nn.Linear-like scale).
        bound = 1.0 / float(d) ** 0.5
        self.W = jax.random.uniform(kw, (d, 1), jnp.float32, -bound, bound)
        self.b = jax.random.uniform(kb, (1,), jnp.float32, -bound, bound)

        # Full-width weight row: actionable weights scattered into a zero row so
        # the kernel streams the original (B, in_features) x with no wrapper
        # gather.  x @ w_full == x[:, actionable_features] @ W.
        if actionable_mask:
            idx = jnp.asarray(actionable_features, dtype=jnp.int32)
            w_full = jnp.zeros((in_features,), jnp.float32).at[idx].set(
                self.W.reshape(-1))
        else:
            w_full = self.W.reshape(-1)
        self._w_row = w_full.reshape(1, -1)          # (1, D_full) for the kernel

        self._fns = {}                               # want-tuple -> jitted fn
        self.set_threshold(threshold)

    # ---- threshold API (mirrors torch module) -------------------------------
    def set_threshold(self, threshold):
        self.threshold = float(threshold)
        # Traced SMEM operand [bias, threshold] -> no recompile on change.
        self._scalars = jnp.array([float(self.b[0]), self.threshold],
                                  jnp.float32)

    def get_threshold(self):
        return self.threshold

    def get_threshold_logits(self):
        p = min(max(self.threshold, 0.001), 0.999)
        return math.log(p) - math.log(1.0 - p)

    # TODO(synk): set_max_mcc_threshold needs the external mcc_scores() helper
    # (MCC sweep over thresholds); not reproduced here.

    # ---- forward-pass API (single fused kernel launch per call) -------------
    def _run(self, want, x):
        fn = self._fns.get(want)
        if fn is None:
            fn = jax.jit(functools.partial(_classifier_forward_impl,
                                           want=want,
                                           tile_rows=self._tile_rows))
            self._fns[want] = fn
        return fn(x, self._w_row, self._scalars)

    def logits(self, x):
        return self._run((True, False, False), x)[0]

    def probs(self, x):
        return self._run((False, True, False), x)[0]

    def predict(self, x):
        return self._run((False, False, True), x)[0]

    def logits_predict(self, x):
        logits, preds = self._run((True, False, True), x)
        return logits, preds

    def probs_predict(self, x):
        probs, preds = self._run((False, True, True), x)
        return probs, preds

    def forward(self, x):
        return self.logits(x)

    __call__ = forward


if __name__ == "__main__":
    # --- small single-tile check (B=8, D=32) ---------------------------------
    B, D = 8, 32
    x = jax.random.normal(jax.random.PRNGKey(0), (B, D), jnp.float32)
    clf = PallasClassifier(in_features=D, threshold=0.5,
                           key=jax.random.PRNGKey(1))

    logits = jax.block_until_ready(clf(x))
    probs = jax.block_until_ready(clf.probs(x))
    preds = jax.block_until_ready(clf.predict(x))

    ref_logits = (x @ clf.W).reshape(-1) + clf.b[0]
    ref_probs = jax.nn.sigmoid(ref_logits)
    ref_preds = (ref_probs >= clf.threshold).astype(jnp.int32)

    assert logits.shape == (B,) and probs.shape == (B,) and preds.shape == (B,)
    assert jnp.allclose(logits, ref_logits, atol=1e-5)
    assert jnp.allclose(probs, ref_probs, atol=1e-5)
    assert jnp.array_equal(preds, ref_preds)

    # --- multi-tile ragged-last-block path (B=200, 128-row tiles, no pad) ----
    B2 = 200
    x2 = jax.random.normal(jax.random.PRNGKey(2), (B2, D), jnp.float32)
    clf2 = PallasClassifier(in_features=D, threshold=0.5,
                            key=jax.random.PRNGKey(1), tile_rows=128)
    probs2, preds2 = clf2.probs_predict(x2)
    probs2 = jax.block_until_ready(probs2)
    preds2 = jax.block_until_ready(preds2)

    ref_logits2 = (x2 @ clf2.W).reshape(-1) + clf2.b[0]
    ref_probs2 = jax.nn.sigmoid(ref_logits2)
    ref_preds2 = (ref_probs2 >= clf2.threshold).astype(jnp.int32)

    assert probs2.shape == (B2,) and preds2.shape == (B2,)
    assert jnp.allclose(probs2, ref_probs2, atol=1e-5)
    assert jnp.array_equal(preds2, ref_preds2)

    # --- actionable-feature mask (zero-extended weight row, no gather) -------
    clf3 = PallasClassifier(in_features=D, actionable_mask=True,
                            actionable_features=[0, 3, 7], threshold=0.5,
                            key=jax.random.PRNGKey(3))
    logits3 = jax.block_until_ready(clf3(x))
    ref_logits3 = (x[:, jnp.array([0, 3, 7])] @ clf3.W).reshape(-1) + clf3.b[0]
    assert logits3.shape == (B,)
    assert jnp.allclose(logits3, ref_logits3, atol=1e-5)

    # --- native-dtype input path (bf16 x streamed as bf16, cast in-kernel) ---
    x_bf = x.astype(jnp.bfloat16)
    logits_bf = jax.block_until_ready(clf(x_bf))
    ref_bf = (x_bf.astype(jnp.float32) @ clf.W).reshape(-1) + clf.b[0]
    assert logits_bf.dtype == jnp.float32
    assert jnp.allclose(logits_bf, ref_bf, atol=1e-4)

    # --- threshold update without recompilation ------------------------------
    clf.set_threshold(0.9)
    preds_hi = jax.block_until_ready(clf.predict(x))
    assert jnp.array_equal(preds_hi, (ref_probs >= 0.9).astype(jnp.int32))

    print("KERNEL_OK")
</pallas_src>

<mosaic_0001>
module attributes {stable_mosaic.version = 11 : i64} {
  func.func @_classifier_kernel(%arg0: i32, %arg1: memref<8x32xf32, #tpu.memory_space<vmem>>, %arg2: memref<1x32xf32, #tpu.memory_space<vmem>>, %arg3: memref<2xf32, #tpu.memory_space<smem>>, %arg4: memref<1x8xf32, #tpu.memory_space<vmem>>) attributes {dimension_semantics = [#tpu.dimension_semantics<parallel>], iteration_bounds = array<i64: 1>, scalar_prefetch = 0 : i64, scratch_operands = 0 : i64, tpu.core_type = #tpu.core_type<tc>, window_params = [{transform_indices = @transform_0, window_bounds = array<i64: 8, 32>}, {pipeline_mode = #tpu.pipeline_mode<synchronous>, transform_indices = @transform_1, window_bounds = array<i64: 1, 32>}, {transform_indices = @transform_2, window_bounds = array<i64: 2>}, {transform_indices = @transform_3, window_bounds = array<i64: 1, 8>}]} {
    %c0 = arith.constant 0 : index
    %c0_0 = arith.constant 0 : index
    %0 = vector.load %arg1[%c0, %c0_0] : memref<8x32xf32, #tpu.memory_space<vmem>>, vector<8x32xf32>
    %c0_1 = arith.constant 0 : index
    %c0_2 = arith.constant 0 : index
    %1 = vector.load %arg2[%c0_1, %c0_2] : memref<1x32xf32, #tpu.memory_space<vmem>>, vector<1x32xf32>
    %c0_3 = arith.constant 0 : index
    %2 = memref.load %arg3[%c0_3] : memref<2xf32, #tpu.memory_space<smem>>
    %3 = vector.broadcast %1 : vector<1x32xf32> to vector<8x32xf32>
    %4 = arith.mulf %0, %3 : vector<8x32xf32>
    %cst = arith.constant dense<0.000000e+00> : vector<8xf32>
    %5 = vector.multi_reduction <add>, %4, %cst [1] : vector<8x32xf32> to vector<8xf32>
    %6 = vector.shape_cast %5 : vector<8xf32> to vector<1x8xf32>
    %7 = vector.broadcast %2 : f32 to vector<1x8xf32>
    %8 = arith.addf %6, %7 : vector<1x8xf32>
    %c0_4 = arith.constant 0 : index
    %c0_5 = arith.constant 0 : index
    %9 = vector.load %arg4[%c0_4, %c0_5] : memref<1x8xf32, #tpu.memory_space<vmem>>, vector<1x8xf32>
    tpu.vector_store %arg4[%c0_4, %c0_5], %8 {strides = array<i32>} : memref<1x8xf32, #tpu.memory_space<vmem>>, vector<1x8xf32>,
    return
  }
  func.func @transform_0(%arg0: i32) -> (i32, i32) {
    %c0_i32 = arith.constant 0 : i32
    %c0_i32_0 = arith.constant 0 : i32
    return %arg0, %c0_i32 : i32, i32
  }
  func.func @transform_1(%arg0: i32) -> (i32, i32) {
    %c0_i32 = arith.constant 0 : i32
    %c0_i32_0 = arith.constant 0 : i32
    %c0_i32_1 = arith.constant 0 : i32
    return %c0_i32, %c0_i32_0 : i32, i32
  }
  func.func @transform_2(%arg0: i32) -> i32 {
    %c0_i32 = arith.constant 0 : i32
    %c0_i32_0 = arith.constant 0 : i32
    return %c0_i32 : i32
  }
  func.func @transform_3(%arg0: i32) -> (i32, i32) {
    %c0_i32 = arith.constant 0 : i32
    %c0_i32_0 = arith.constant 0 : i32
    return %c0_i32, %arg0 : i32, i32
  }
}

</mosaic_0001>

<llo_original>
// kernel: _classifier_forward_impl.1
$region0: #{_classifier_forward_impl.1}
  #allocation0 [shape = 'u32[]', space=smem, size = 0x4, offset = 0x4, fixed_abs, tag = 'smem constant byte address 0x4 - core index']
  #allocation1 [shape = 'u32[144,128]{1,0:T(1,128)}', space=vmem, size = 0x12000, scoped, tag = 'internal scratch']
  %s0 = inlined_call_operand.hbm [shape: f32[8,32], index: 0, kind: input, shape index: {}]
  %s1 = inlined_call_operand.vmem [shape: f32[1,32], index: 1, kind: input, shape index: {}]
  %s2 = inlined_call_operand.vmem [shape: f32[2], index: 2, kind: input, shape index: {}]
  %s3 = inlined_call_operand.hbm [shape: f32[1,8], index: 3, kind: output, shape index: {}]
  %s4 = sld [smem:[#allocation0]]
  $region30: #{_classifier_forward_impl.1} parent=0
    _
  %s6 = ssub.s32 1, %s4
  %s7 = scalar_select 0, %s6, %s4
  $region1: #{_classifier_forward_impl.1} parent=0
    #allocation2 [shape = 'u8[4096]{0}', space=vmem, size = 0x1000, scoped, tag = 'input window, operand 0, single buffered']
    #allocation3 [shape = 's32[1]{0}', space=sflag, size = 0x4, scoped, tag = 'scoped memory for _classifier_forward_impl.1']
    #allocation4 [shape = 's32[1]{0}', space=sflag, size = 0x4, scoped, tag = 'scoped memory for _classifier_forward_impl.1']
    #allocation5 [shape = 's32[1]{0}', space=sflag, size = 0x4, scoped, tag = 'scoped memory for _classifier_forward_impl.1']
    #allocation6 [shape = 'u8[512]{0}', space=smem, size = 0x200, scoped, tag = 'input window, operand 2, single buffered']
    #allocation7 [shape = 'u8[512]{0}', space=vmem, size = 0x400, scoped, tag = 'output window, operand 0, single buffered']
    %8 = vsyncpa [#allocation3], 0
    %9 = vsyncpa [#allocation5], 0
    %10 = vsyncpa [#allocation4], 0
    // Predicated region
    $region2: #{_classifier_forward_impl.1} parent=1 // pred_check
      _
    $region3: #{_classifier_forward_impl.1} parent=1 // pred_check_branch
      %12 = sbr.rel (0) target = $region5
    $region4: #{_classifier_forward_impl.1} parent=1 // pred_region
      %s14 = ssub.s32 128, 128
      %15 = vsyncadd [#allocation3], %s14
      %s17 = sshll.u32 [#allocation2], 4
      %s18 = int_to_ptr.vmem [resolvable:$true] %s17
      %20 = dma.hbm_to_vmem [thread:$0]  %s0, 128, %s18, [#allocation3]
    $region5: #{_classifier_forward_impl.1} parent=1 // pred_fallthru
      _
    // Predicated region
    $region6: #{_classifier_forward_impl.1} parent=1 // pred_check
      _
    $region7: #{_classifier_forward_impl.1} parent=1 // pred_check_branch
      %22 = sbr.rel (0) target = $region9
    $region8: #{_classifier_forward_impl.1} parent=1 // pred_region
      _
    $region9: #{_classifier_forward_impl.1} parent=1 // pred_fallthru
      _
    // Predicated region
    $region10: #{_classifier_forward_impl.1} parent=1 // pred_check
      _
    $region11: #{_classifier_forward_impl.1} parent=1 // pred_check_branch
      %24 = sbr.rel (0) target = $region13
    $region12: #{_classifier_forward_impl.1} parent=1 // pred_region
      %s26 = ssub.s32 16, 16
      %27 = vsyncadd [#allocation5], %s26
      %s29 = sshll.u32 %s2, 4
      %s30 = int_to_ptr.vmem [resolvable:$true] %s29
      %32 = dma.vmem_to_smem %s30, 16, [#allocation6], [#allocation5]
    $region13: #{_classifier_forward_impl.1} parent=1 // pred_fallthru
      _
    // Predicated region
    $region14: #{_classifier_forward_impl.1} parent=1 // pred_check
      _
    $region15: #{_classifier_forward_impl.1} parent=1 // pred_check_branch
      %34 = sbr.rel (0) target = $region17
    $region16: #{_classifier_forward_impl.1} parent=1 // pred_region
      %35 = dma.done [#allocation3], 128
    $region17: #{_classifier_forward_impl.1} parent=1 // pred_fallthru
      _
    // Predicated region
    $region18: #{_classifier_forward_impl.1} parent=1 // pred_check
      _
    $region19: #{_classifier_forward_impl.1} parent=1 // pred_check_branch
      %37 = sbr.rel (0) target = $region21
    $region20: #{_classifier_forward_impl.1} parent=1 // pred_region
      %38 = dma.done [#allocation5], 16
    $region21: #{_classifier_forward_impl.1} parent=1 // pred_fallthru
      _
    %39 = sfence
    %v40 = vld [vmem:[#allocation2] sm:$0xff]
    %v41 = vld [vmem:[%s1] sm:$0x1]
    %s42 = sld [smem:[#allocation6]]
    %v44 = vlaneseq
    %v45 = vshrl.u32 %v44, 7
    %v46 = vsub.s32 0, %v45
    %v47 = vrot.slane %v41, %v46
    %v49 = vmul.f32 %v40, %v47
    %vm50 = vcmask 261120
    %v51 = vsel %vm50, %v49, 0.0
    %52 = vadd.xlane.f32.xlu0 %v51
    %v53 = vpop.xlane.xlu0 %52
    %v54 = vstv %s42
    %v55 = vadd.f32 %v53, %v54
    %v57 = vlaneseq
    %v58 = vand.u32 %v57, 127
    %v59 = vlaneseq
    %v60 = vshrl.u32 %v59, 7
    %v61 = vsub.s32 %v58, %v60
    %v62 = vrot.slane %v55, %v61
    %vm64 = vcmask 57344
    %65 = vst.msk [vmem:[#allocation7] sm:$0x1] %vm64, %v62
    // Predicated region
    $region22: #{_classifier_forward_impl.1} parent=1 // pred_check
      _
    $region23: #{_classifier_forward_impl.1} parent=1 // pred_check_branch
      %67 = sbr.rel (0) target = $region25
    $region24: #{_classifier_forward_impl.1} parent=1 // pred_region
      %s69 = ssub.s32 16, 16
      %70 = vsyncadd [#allocation4], %s69
      %s72 = sshll.u32 [#allocation7], 4
      %s73 = int_to_ptr.vmem [resolvable:$true] %s72
      %75 = dma.vmem_to_hbm [thread:$0]  %s73, 16, %s3, [#allocation4]
    $region25: #{_classifier_forward_impl.1} parent=1 // pred_fallthru
      _
    // Predicated region
    $region26: #{_classifier_forward_impl.1} parent=1 // pred_check
      _
    $region27: #{_classifier_forward_impl.1} parent=1 // pred_check_branch
      %77 = sbr.rel (0) target = $region29
    $region28: #{_classifier_forward_impl.1} parent=1 // pred_region
      %78 = dma.done [#allocation4], 16
    $region29: #{_classifier_forward_impl.1} parent=1 // pred_fallthru
      _
    %79 = vsyncpa [#allocation3], 1
    %80 = vsyncpa [#allocation4], 1
    %81 = vsyncpa [#allocation5], 1

</llo_original>
